<compile_context>
chip_gen: v5e
topology: v5e:2x2
jax: 0.10.0
libtpu: 0.0.40
codegen_flags: <defaults>
</compile_context>

<pallas_src>
import math
import functools

import jax
import jax.numpy as jnp
from jax.experimental import pallas as pl
from jax.experimental.pallas import tpu as pltpu


_VMEM_SOFT_BUDGET = 20 * 1024 * 1024   # buffer budget used when picking tiles
_VMEM_LIMIT_BYTES = 32 * 1024 * 1024   # scoped-VMEM limit (safe on v5e/v6e/v7x)


# ---------------------------------------------------------------------------
# tiling helpers
# ---------------------------------------------------------------------------
def _pick_tile(dim, target, align=8):
    """Largest divisor of `dim` that is <= target and a multiple of `align`.
    Falls back to the full dim (always layout-legal) only if no aligned divisor
    exists."""
    if dim <= target:
        return dim
    for d in range(target, align - 1, -1):
        if dim % d == 0 and d % align == 0:
            return d
    # TODO(synk): pad + mask instead of a single full-dim tile for pathological dims.
    return dim


def _pick_q_tile(nq, est_fn, budget, target=512):
    """Largest q-tile (divisor of nq, multiple of 8 when possible) whose
    estimated VMEM footprint fits `budget`."""
    cands = [d for d in range(min(nq, target), 0, -1) if nq % d == 0]
    aligned = [d for d in cands if d % 8 == 0 or d == nq]
    pool = aligned if aligned else cands   # TODO(synk): pad+mask for pathological Nq
    for tq in pool:
        if est_fn(tq) <= budget:
            return tq
    return pool[-1]


# ---------------------------------------------------------------------------
# Linear (x @ W + b) kernel, tiled & pipelined.  W is pre-transposed (in, out).
# bf16 operands, f32 accumulation in a VMEM scratch.
# ---------------------------------------------------------------------------
def _linear_kernel(x_ref, w_ref, b_ref, o_ref, acc_ref):
    @pl.when(pl.program_id(2) == 0)
    def _():
        acc_ref[...] = jnp.zeros_like(acc_ref)

    acc_ref[...] += jnp.dot(x_ref[...], w_ref[...],
                            preferred_element_type=jnp.float32)

    @pl.when(pl.program_id(2) == pl.num_programs(2) - 1)
    def _():
        o_ref[...] = (acc_ref[...] + b_ref[...]).astype(o_ref.dtype)


def linear(x2d, w_in_out, b_row, *, out_dtype,
           compute_dtype=jnp.bfloat16, tm=512, tn=1024, tk=512):
    """x2d: (M, K), w_in_out: (K, N), b_row: (1, N) -> (M, N)."""
    M, K = x2d.shape
    N = w_in_out.shape[1]
    tm = _pick_tile(M, tm, 8)
    tn = _pick_tile(N, tn, 128)
    tk = _pick_tile(K, tk, 128)

    x_c = x2d if x2d.dtype == compute_dtype else x2d.astype(compute_dtype)
    w_c = w_in_out if w_in_out.dtype == compute_dtype else w_in_out.astype(compute_dtype)
    b_c = b_row if b_row.dtype == jnp.float32 else b_row.astype(jnp.float32)

    return pl.pallas_call(
        _linear_kernel,
        out_shape=jax.ShapeDtypeStruct((M, N), out_dtype),
        grid=(M // tm, N // tn, K // tk),
        in_specs=[
            pl.BlockSpec((tm, tk), lambda i, j, k: (i, k)),
            pl.BlockSpec((tk, tn), lambda i, j, k: (k, j)),
            pl.BlockSpec((1, tn), lambda i, j, k: (0, j)),
        ],
        out_specs=pl.BlockSpec((tm, tn), lambda i, j, k: (i, j)),
        scratch_shapes=[pltpu.VMEM((tm, tn), jnp.float32)],
        compiler_params=pltpu.CompilerParams(
            dimension_semantics=("parallel", "parallel", "arbitrary"),
            vmem_limit_bytes=_VMEM_LIMIT_BYTES),
    )(x_c, w_c, b_c)


# ---------------------------------------------------------------------------
# Scaled dot-product attention.  Grid = (B, Nq//tq).  Each step reads a
# (tq, Cq) stripe of projection rows (Q columns) and the full (Nk, Ckv) block
# of K/V rows for that batch, loops over heads with static column slices, and
# writes a lane-dense (tq, h*d_k) context block plus (optionally) the (h, tq,
# Nk) attention-map stripe.  Q is already scaled by 1/sqrt(d_k) (folded into
# wq at parameter-prep time).
# ---------------------------------------------------------------------------
def _attention_kernel(q_rows_ref, kv_rows_ref, o_ref, p_ref=None, *,
                      h, d_k, q_off, k_off, v_off):
    ctx_heads = []
    for i in range(h):
        qs = q_off + i * d_k
        ks = k_off + i * d_k
        vs = v_off + i * d_k
        q_h = q_rows_ref[0, :, qs:qs + d_k]           # (tq, d_k)  bf16, pre-scaled
        k_h = kv_rows_ref[0, :, ks:ks + d_k]          # (Nk, d_k)  bf16
        v_h = kv_rows_ref[0, :, vs:vs + d_k]          # (Nk, d_k)  bf16

        # QK^T contracted over d_k directly (no materialized transpose of K).
        scores = jnp.einsum("qd,kd->qk", q_h, k_h,
                            preferred_element_type=jnp.float32)   # (tq, Nk) f32

        # numerically stable softmax along the key axis, f32 math
        m = jnp.max(scores, axis=-1, keepdims=True)
        e = jnp.exp(scores - m)
        denom = jnp.sum(e, axis=-1, keepdims=True)
        recip = pl.reciprocal(denom)                  # exact: map rows sum to 1

        if p_ref is not None:
            p = e * recip
            p_ref[0, i] = p.astype(p_ref.dtype)       # lane-dense (tq, Nk) store
            ctx_h = jnp.dot(p.astype(v_h.dtype), v_h,
                            preferred_element_type=jnp.float32)   # (tq, d_k) f32
        else:
            # flash-style: skip the O(tq*Nk) normalization pass, normalize after PV
            ctx_h = jnp.dot(e.astype(v_h.dtype), v_h,
                            preferred_element_type=jnp.float32) * recip
        ctx_heads.append(ctx_h)

    ctx = jnp.concatenate(ctx_heads, axis=-1)         # (tq, h*d_k), one dense store
    o_ref[0] = ctx.astype(o_ref.dtype)


def scaled_dot_product_attention(q_rows, kv_rows, *, h, d_k,
                                 q_off, k_off, v_off,
                                 out_dtype=jnp.bfloat16,
                                 return_attention_map=True,
                                 attn_map_dtype=jnp.bfloat16,
                                 tq_target=512):
    """q_rows: (B, Nq, Cq) projection rows holding Q columns at q_off;
    kv_rows: (B, Nk, Ckv) projection rows holding K/V columns at k_off/v_off.
    Returns (context (B, Nq, h*d_k), attention map (B, h, Nq, Nk) or None)."""
    B, Nq, Cq = q_rows.shape
    Bk, Nk, Ckv = kv_rows.shape
    assert Bk == B
    d_model = h * d_k
    assert q_off + d_model <= Cq
    assert k_off + d_model <= Ckv and v_off + d_model <= Ckv

    in_b = jnp.dtype(q_rows.dtype).itemsize
    out_b = jnp.dtype(out_dtype).itemsize
    map_b = jnp.dtype(attn_map_dtype).itemsize if return_attention_map else 0

    def est(tq):                                      # resident VMEM per grid step
        return (2 * tq * Cq * in_b                    # Q-row blocks (double buffered)
                + 2 * Nk * Ckv * in_b                 # K/V-row blocks (double buffered)
                + 2 * tq * d_model * out_b            # context output blocks
                + 2 * h * tq * Nk * map_b             # attention-map output blocks
                + 4 * tq * Nk * 4                     # per-head f32 scores/exp temporaries
                + 3 * tq * d_model * 4)               # per-head f32 context + concat

    tq = _pick_q_tile(Nq, est, _VMEM_SOFT_BUDGET, tq_target)
    # v7x has 2 TensorCores per chip: keep >= 2 parallel grid steps when possible.
    while B * (Nq // tq) < 2 and tq % 16 == 0 and tq > 8:
        tq //= 2

    kernel = functools.partial(_attention_kernel, h=h, d_k=d_k,
                               q_off=q_off, k_off=k_off, v_off=v_off)
    grid = (B, Nq // tq)
    in_specs = [pl.BlockSpec((1, tq, Cq), lambda b, t: (b, t, 0)),
                pl.BlockSpec((1, Nk, Ckv), lambda b, t: (b, 0, 0))]
    ctx_shape = jax.ShapeDtypeStruct((B, Nq, d_model), out_dtype)
    ctx_spec = pl.BlockSpec((1, tq, d_model), lambda b, t: (b, t, 0))

    vmem_limit = int(min(96 * 1024 * 1024,
                         max(_VMEM_LIMIT_BYTES, est(tq) + 8 * 1024 * 1024)))
    cparams = pltpu.CompilerParams(
        dimension_semantics=("parallel", "parallel"),
        vmem_limit_bytes=vmem_limit)

    if return_attention_map:
        ctx, attn = pl.pallas_call(
            kernel,
            out_shape=(ctx_shape,
                       jax.ShapeDtypeStruct((B, h, Nq, Nk), attn_map_dtype)),
            grid=grid,
            in_specs=in_specs,
            out_specs=(ctx_spec,
                       pl.BlockSpec((1, h, tq, Nk), lambda b, t: (b, 0, t, 0))),
            compiler_params=cparams,
        )(q_rows, kv_rows)
        return ctx, attn

    ctx = pl.pallas_call(
        kernel, out_shape=ctx_shape, grid=grid,
        in_specs=in_specs, out_specs=ctx_spec,
        compiler_params=cparams,
    )(q_rows, kv_rows)
    return ctx, None


# ---------------------------------------------------------------------------
# Parameter preparation (done once, outside the forward): fold 1/sqrt(d_k)
# into wq/bq, build fused QKV / KV weights, cast weights to the compute dtype.
# ---------------------------------------------------------------------------
def prepare_params(params, h, compute_dtype=jnp.bfloat16):
    d_model = params["wq"].shape[0]
    assert d_model % h == 0
    d_k = d_model // h
    scale = jnp.float32(1.0 / math.sqrt(d_k))

    wq_s = params["wq"].astype(jnp.float32) * scale
    bq_s = params["bq"].astype(jnp.float32) * scale
    f32 = jnp.float32
    return {
        "d_model": d_model, "h": h, "d_k": d_k,
        # fused QKV projection (self-attention)
        "w_qkv": jnp.concatenate([wq_s, params["wk"], params["wv"]], axis=1
                                 ).astype(compute_dtype),
        "b_qkv": jnp.concatenate([bq_s, params["bk"], params["bv"]], axis=1
                                 ).astype(f32),
        # separate Q projection + fused KV projection (cross-attention, key is value)
        "w_q": wq_s.astype(compute_dtype), "b_q": bq_s.astype(f32),
        "w_kv": jnp.concatenate([params["wk"], params["wv"]], axis=1
                                ).astype(compute_dtype),
        "b_kv": jnp.concatenate([params["bk"], params["bv"]], axis=1).astype(f32),
        # fully separate K/V projections (distinct key and value tensors)
        "w_k": params["wk"].astype(compute_dtype), "b_k": params["bk"].astype(f32),
        "w_v": params["wv"].astype(compute_dtype), "b_v": params["bv"].astype(f32),
        # output projection
        "w_o": params["wo"].astype(compute_dtype), "b_o": params["bo"].astype(f32),
    }


# ---------------------------------------------------------------------------
# MultiHeadedAttention forward (mask=None, boxes_vector=None, eval-mode dropout)
# ---------------------------------------------------------------------------
def multi_headed_attention(query, key, value, prep, *,
                           mask=None, boxes_vector=None, align=None,
                           compute_dtype=jnp.bfloat16,
                           return_attention_map=True,
                           attn_map_dtype=jnp.bfloat16):
    """query/key/value: (B, N, d_model).  Returns (out (B, Nq, d_model),
    attention_map (B, h, Nq, Nk) or None)."""
    if mask is not None:
        raise NotImplementedError(
            "TODO(synk): mask path (masked_fill(mask==0, -9999)) not implemented")
    if boxes_vector is not None or align is not None:
        raise NotImplementedError(
            "TODO(synk): boxes_vector / align branches not implemented")

    B, Nq, d_model = query.shape
    h, d_k = prep["h"], prep["d_k"]
    assert d_model == prep["d_model"]
    Nk = key.shape[1]

    # NOTE: fused path keyed on Python object identity; with separately passed
    # (but equal) arrays it falls back to separate projections (perf only).
    if (query is key) and (key is value):
        y = linear(query.reshape(-1, d_model), prep["w_qkv"], prep["b_qkv"],
                   out_dtype=compute_dtype, compute_dtype=compute_dtype)
        q_rows = y.reshape(B, Nq, 3 * d_model)        # free reshape: [q|k|v] columns
        kv_rows = q_rows
        q_off, k_off, v_off = 0, d_model, 2 * d_model
    else:
        q_rows = linear(query.reshape(-1, d_model), prep["w_q"], prep["b_q"],
                        out_dtype=compute_dtype, compute_dtype=compute_dtype
                        ).reshape(B, Nq, d_model)
        q_off = 0
        if key is value:
            kv_rows = linear(key.reshape(-1, d_model), prep["w_kv"], prep["b_kv"],
                             out_dtype=compute_dtype, compute_dtype=compute_dtype
                             ).reshape(B, Nk, 2 * d_model)
        else:
            k2d = linear(key.reshape(-1, d_model), prep["w_k"], prep["b_k"],
                         out_dtype=compute_dtype, compute_dtype=compute_dtype)
            v2d = linear(value.reshape(-1, d_model), prep["w_v"], prep["b_v"],
                         out_dtype=compute_dtype, compute_dtype=compute_dtype)
            # TODO(synk): distinct key/value needs one XLA concat to build the fused
            # KV row layout; a 3-input attention kernel would remove this copy.
            kv_rows = jnp.concatenate([k2d, v2d], axis=-1).reshape(B, Nk, 2 * d_model)
        k_off, v_off = 0, d_model

    ctx, attn_map = scaled_dot_product_attention(
        q_rows, kv_rows, h=h, d_k=d_k, q_off=q_off, k_off=k_off, v_off=v_off,
        out_dtype=compute_dtype, return_attention_map=return_attention_map,
        attn_map_dtype=attn_map_dtype)

    # dropout(p_attn) treated as identity (eval mode).
    out = linear(ctx.reshape(-1, d_model), prep["w_o"], prep["b_o"],
                 out_dtype=jnp.float32, compute_dtype=compute_dtype)
    return out.reshape(B, Nq, d_model), attn_map


# ---------------------------------------------------------------------------
# Deterministic parameter init (mimics nn.Linear's uniform(-1/sqrt(fan_in), ...))
# ---------------------------------------------------------------------------
def init_params(key, d_model, dtype=jnp.float32):
    bound = 1.0 / math.sqrt(d_model)
    keys = jax.random.split(key, 8)

    def lin(kw, kb):
        w = jax.random.uniform(kw, (d_model, d_model), dtype, -bound, bound)  # (in, out)
        b = jax.random.uniform(kb, (1, d_model), dtype, -bound, bound)
        return w, b

    wq, bq = lin(keys[0], keys[1])
    wk, bk = lin(keys[2], keys[3])
    wv, bv = lin(keys[4], keys[5])
    wo, bo = lin(keys[6], keys[7])
    return dict(wq=wq, bq=bq, wk=wk, bk=bk, wv=wv, bv=bv, wo=wo, bo=bo)


# ---------------------------------------------------------------------------
# Pure-JAX f32 reference for sanity check
# ---------------------------------------------------------------------------
def reference(query, key, value, params, h):
    B, N, d_model = query.shape
    d_k = d_model // h

    def project(x, w, b):
        y = x.reshape(-1, d_model) @ w + b
        return jnp.transpose(y.reshape(B, -1, h, d_k), (0, 2, 1, 3))

    q = project(query, params["wq"], params["bq"])
    k = project(key, params["wk"], params["bk"])
    v = project(value, params["wv"], params["bv"])
    scores = jnp.einsum("bhnd,bhmd->bhnm", q, k) / math.sqrt(d_k)
    p = jax.nn.softmax(scores, axis=-1)
    ctx = jnp.einsum("bhnm,bhmd->bhnd", p, v)
    ctx = jnp.transpose(ctx, (0, 2, 1, 3)).reshape(B, N, d_model)
    out = (ctx.reshape(-1, d_model) @ params["wo"] + params["bo"]).reshape(B, N, d_model)
    return out, p


if __name__ == "__main__":
    B, N, d_model, h = 2, 8, 32, 4

    root = jax.random.PRNGKey(0)
    kp, kq, kk, kv = jax.random.split(root, 4)

    params = init_params(kp, d_model)
    prep = prepare_params(params, h)          # fused / pre-scaled weights, built once
    query = jax.random.normal(kq, (B, N, d_model), jnp.float32)
    key_x = jax.random.normal(kk, (B, N, d_model), jnp.float32)
    value = jax.random.normal(kv, (B, N, d_model), jnp.float32)

    # --- self-attention path (query is key is value): fused QKV projection ---
    out_s, attn_s = multi_headed_attention(query, query, query, prep)
    out_s = jax.block_until_ready(out_s)
    attn_s = jax.block_until_ready(attn_s)
    ref_out_s, ref_attn_s = reference(query, query, query, params, h)
    assert out_s.shape == (B, N, d_model)
    assert attn_s.shape == (B, h, N, N)
    # bf16 matmul operands (f32 accumulation) + bf16 attention map -> loosened tolerance
    assert jnp.allclose(out_s, ref_out_s, atol=5e-2, rtol=5e-2)
    assert jnp.allclose(attn_s.astype(jnp.float32), ref_attn_s, atol=3e-2, rtol=3e-2)

    # --- cross-attention path (distinct q/k/v): separate projections ---------
    out_c, attn_c = multi_headed_attention(query, key_x, value, prep)
    out_c = jax.block_until_ready(out_c)
    attn_c = jax.block_until_ready(attn_c)
    ref_out_c, ref_attn_c = reference(query, key_x, value, params, h)
    assert out_c.shape == (B, N, d_model)
    assert attn_c.shape == (B, h, N, N)
    assert jnp.allclose(out_c, ref_out_c, atol=5e-2, rtol=5e-2)
    assert jnp.allclose(attn_c.astype(jnp.float32), ref_attn_c, atol=3e-2, rtol=3e-2)

    print("KERNEL_OK")
</pallas_src>

<mosaic_0001>
module attributes {stable_mosaic.version = 11 : i64} {
  func.func @_linear_kernel(%arg0: i32, %arg1: i32, %arg2: i32, %arg3: memref<16x32xbf16, #tpu.memory_space<vmem>>, %arg4: memref<32x96xbf16, #tpu.memory_space<vmem>>, %arg5: memref<1x96xf32, #tpu.memory_space<vmem>>, %arg6: memref<16x96xbf16, #tpu.memory_space<vmem>>, %arg7: memref<16x96xf32, #tpu.memory_space<vmem>>) attributes {dimension_semantics = [#tpu.dimension_semantics<parallel>, #tpu.dimension_semantics<parallel>, #tpu.dimension_semantics<arbitrary>], iteration_bounds = array<i64: 1, 1, 1>, scalar_prefetch = 0 : i64, scratch_operands = 1 : i64, tpu.core_type = #tpu.core_type<tc>, window_params = [{transform_indices = @transform_0, window_bounds = array<i64: 16, 32>}, {transform_indices = @transform_1, window_bounds = array<i64: 32, 96>}, {transform_indices = @transform_2, window_bounds = array<i64: 1, 96>}, {transform_indices = @transform_3, window_bounds = array<i64: 16, 96>}]} {
    %c0_i32 = arith.constant 0 : i32
    %0 = arith.cmpi eq, %arg2, %c0_i32 : i32
    %1 = arith.extui %0 : i1 to i32
    %c0_i32_0 = arith.constant 0 : i32
    %2 = arith.cmpi ne, %1, %c0_i32_0 : i32
    scf.if %2 {
      %cst_10 = arith.constant 0.000000e+00 : f32
      %12 = vector.broadcast %cst_10 : f32 to vector<16x96xf32>
      %c0_11 = arith.constant 0 : index
      %c0_12 = arith.constant 0 : index
      %13 = vector.load %arg7[%c0_11, %c0_12] : memref<16x96xf32, #tpu.memory_space<vmem>>, vector<16x96xf32>
      tpu.vector_store %arg7[%c0_11, %c0_12], %12 {strides = array<i32>} : memref<16x96xf32, #tpu.memory_space<vmem>>, vector<16x96xf32>,
    } else {
    }
    %c0 = arith.constant 0 : index
    %c0_1 = arith.constant 0 : index
    %3 = vector.load %arg7[%c0, %c0_1] : memref<16x96xf32, #tpu.memory_space<vmem>>, vector<16x96xf32>
    %c0_2 = arith.constant 0 : index
    %c0_3 = arith.constant 0 : index
    %4 = vector.load %arg3[%c0_2, %c0_3] : memref<16x32xbf16, #tpu.memory_space<vmem>>, vector<16x32xbf16>
    %c0_4 = arith.constant 0 : index
    %c0_5 = arith.constant 0 : index
    %5 = vector.load %arg4[%c0_4, %c0_5] : memref<32x96xbf16, #tpu.memory_space<vmem>>, vector<32x96xbf16>
    %cst = arith.constant dense<0.000000e+00> : vector<16x96xf32>
    %6 = tpu.matmul %4, %5, %cst {dimension_numbers = #tpu.dot_dimension_numbers<[1], [0], [0], [1], [0, 0, 1, 1], [], []>} : vector<16x32xbf16>, vector<32x96xbf16>, vector<16x96xf32> -> vector<16x96xf32>
    %7 = arith.addf %3, %6 : vector<16x96xf32>
    %c0_6 = arith.constant 0 : index
    %c0_7 = arith.constant 0 : index
    %8 = vector.load %arg7[%c0_6, %c0_7] : memref<16x96xf32, #tpu.memory_space<vmem>>, vector<16x96xf32>
    tpu.vector_store %arg7[%c0_6, %c0_7], %7 {strides = array<i32>} : memref<16x96xf32, #tpu.memory_space<vmem>>, vector<16x96xf32>,
    %c0_i32_8 = arith.constant 0 : i32
    %9 = arith.cmpi eq, %arg2, %c0_i32_8 : i32
    %10 = arith.extui %9 : i1 to i32
    %c0_i32_9 = arith.constant 0 : i32
    %11 = arith.cmpi ne, %10, %c0_i32_9 : i32
    scf.if %11 {
      %c0_10 = arith.constant 0 : index
      %c0_11 = arith.constant 0 : index
      %12 = vector.load %arg7[%c0_10, %c0_11] : memref<16x96xf32, #tpu.memory_space<vmem>>, vector<16x96xf32>
      %c0_12 = arith.constant 0 : index
      %c0_13 = arith.constant 0 : index
      %13 = vector.load %arg5[%c0_12, %c0_13] : memref<1x96xf32, #tpu.memory_space<vmem>>, vector<1x96xf32>
      %14 = vector.broadcast %13 : vector<1x96xf32> to vector<16x96xf32>
      %15 = arith.addf %12, %14 : vector<16x96xf32>
      %16 = arith.truncf %15 : vector<16x96xf32> to vector<16x96xbf16>
      %c0_14 = arith.constant 0 : index
      %c0_15 = arith.constant 0 : index
      %17 = vector.load %arg6[%c0_14, %c0_15] : memref<16x96xbf16, #tpu.memory_space<vmem>>, vector<16x96xbf16>
      tpu.vector_store %arg6[%c0_14, %c0_15], %16 {strides = array<i32>} : memref<16x96xbf16, #tpu.memory_space<vmem>>, vector<16x96xbf16>,
    } else {
    }
    return
  }
  func.func @transform_0(%arg0: i32, %arg1: i32, %arg2: i32) -> (i32, i32) {
    %c0_i32 = arith.constant 0 : i32
    return %arg0, %arg2 : i32, i32
  }
  func.func @transform_1(%arg0: i32, %arg1: i32, %arg2: i32) -> (i32, i32) {
    %c0_i32 = arith.constant 0 : i32
    return %arg2, %arg1 : i32, i32
  }
  func.func @transform_2(%arg0: i32, %arg1: i32, %arg2: i32) -> (i32, i32) {
    %c0_i32 = arith.constant 0 : i32
    %c0_i32_0 = arith.constant 0 : i32
    return %c0_i32, %arg1 : i32, i32
  }
  func.func @transform_3(%arg0: i32, %arg1: i32, %arg2: i32) -> (i32, i32) {
    %c0_i32 = arith.constant 0 : i32
    return %arg0, %arg1 : i32, i32
  }
}

</mosaic_0001>

<llo_original>
// kernel: tpu_custom_call.1
$region0: #{tpu_custom_call.1}
  #allocation0 [shape = 'u32[]', space=smem, size = 0x4, offset = 0x4, fixed_abs, tag = 'smem constant byte address 0x4 - core index']
  #allocation1 [shape = 'u32[72,128]{1,0:T(1,128)}', space=vmem, size = 0x9000, scoped, tag = 'internal scratch']
  #allocation2 [shape = 'f32[16,96]{1,0:T(8,128)}', space=vmem, size = 0x2000, scoped, tag = 'scratch operand']
  %s0 = inlined_call_operand.hbm [shape: bf16[16,32], index: 0, kind: input, shape index: {}]
  %s1 = inlined_call_operand.hbm [shape: bf16[32,96], index: 1, kind: input, shape index: {}]
  %s2 = inlined_call_operand.vmem [shape: f32[1,96], index: 2, kind: input, shape index: {}]
  %s3 = inlined_call_operand.hbm [shape: bf16[16,96], index: 3, kind: output, shape index: {}]
  %s4 = sld [smem:[#allocation0]]
  $region38: #{tpu_custom_call.1} parent=0
    _
  %s6 = ssub.s32 1, %s4
  %s7 = scalar_select 0, %s6, %s4
  $region1: #{tpu_custom_call.1} parent=0
    #allocation3 [shape = 'u8[4096]{0}', space=vmem, size = 0x1000, scoped, tag = 'input window, operand 0, single buffered']
    #allocation4 [shape = 's32[1]{0}', space=sflag, size = 0x4, scoped, tag = 'scoped memory for tpu_custom_call.1']
    #allocation5 [shape = 's32[1]{0}', space=sflag, size = 0x4, scoped, tag = 'scoped memory for tpu_custom_call.1']
    #allocation6 [shape = 'u8[8192]{0}', space=vmem, size = 0x2000, scoped, tag = 'input window, operand 1, single buffered']
    #allocation7 [shape = 's32[1]{0}', space=sflag, size = 0x4, scoped, tag = 'scoped memory for tpu_custom_call.1']
    #allocation8 [shape = 'u8[4096]{0}', space=vmem, size = 0x1000, scoped, tag = 'output window, operand 0, single buffered']
    %8 = vsyncpa [#allocation4], 0
    %9 = vsyncpa [#allocation7], 0
    %10 = vsyncpa [#allocation5], 0
    // Predicated region
    $region2: #{tpu_custom_call.1} parent=1 // pred_check
      _
    $region3: #{tpu_custom_call.1} parent=1 // pred_check_branch
      %12 = sbr.rel (0) target = $region5
    $region4: #{tpu_custom_call.1} parent=1 // pred_region
      %14 = vsyncadd [#allocation4], 0
      %s15 = sshll.u32 %s0, 4
      %s16 = int_to_ptr.hbm [resolvable:$true] %s15
      %s17 = sshll.u32 [#allocation3], 4
      %s18 = int_to_ptr.vmem [resolvable:$true] %s17
      %23 = dma.hbm_to_vmem [thread:$0]  %s16, 128, %s18, [#allocation4], 64, 64, 4
    $region5: #{tpu_custom_call.1} parent=1 // pred_fallthru
      _
    // Predicated region
    $region6: #{tpu_custom_call.1} parent=1 // pred_check
      _
    $region7: #{tpu_custom_call.1} parent=1 // pred_check_branch
      %25 = sbr.rel (0) target = $region9
    $region8: #{tpu_custom_call.1} parent=1 // pred_region
      %27 = vsyncadd [#allocation7], 0
      %s28 = sshll.u32 %s1, 4
      %s29 = int_to_ptr.hbm [resolvable:$true] %s28
      %s30 = sshll.u32 [#allocation6], 4
      %s31 = int_to_ptr.vmem [resolvable:$true] %s30
      %36 = dma.hbm_to_vmem [thread:$0]  %s29, 256, %s31, [#allocation7], 64, 64, 4
    $region9: #{tpu_custom_call.1} parent=1 // pred_fallthru
      _
    // Predicated region
    $region10: #{tpu_custom_call.1} parent=1 // pred_check
      _
    $region11: #{tpu_custom_call.1} parent=1 // pred_check_branch
      %38 = sbr.rel (0) target = $region13
    $region12: #{tpu_custom_call.1} parent=1 // pred_region
      _
    $region13: #{tpu_custom_call.1} parent=1 // pred_fallthru
      _
    // Predicated region
    $region14: #{tpu_custom_call.1} parent=1 // pred_check
      _
    $region15: #{tpu_custom_call.1} parent=1 // pred_check_branch
      %40 = sbr.rel (0) target = $region17
    $region16: #{tpu_custom_call.1} parent=1 // pred_region
      %42 = dma.done [#allocation4], 128
    $region17: #{tpu_custom_call.1} parent=1 // pred_fallthru
      _
    // Predicated region
    $region18: #{tpu_custom_call.1} parent=1 // pred_check
      _
    $region19: #{tpu_custom_call.1} parent=1 // pred_check_branch
      %44 = sbr.rel (0) target = $region21
    $region20: #{tpu_custom_call.1} parent=1 // pred_region
      %46 = dma.done [#allocation7], 256
    $region21: #{tpu_custom_call.1} parent=1 // pred_fallthru
      _
    %p48 = scmp.eq.s32.totalorder 0, 0
    // Predicated region
    $region22: #{tpu_custom_call.1} parent=1 // pred_check
      %p49 = pneg %p48
    $region23: #{tpu_custom_call.1} parent=1 // pred_check_branch
      %51 = sbr.rel (%p49) target = $region25
    $region24: #{tpu_custom_call.1} parent=1 // pred_region
      %vm52 = vcmask 785408
      %53 = vst.msk [vmem:[#allocation2] sm:$0xff] %vm52, 0.0
      %54 = vst.msk [vmem:[#allocation2 + $0x8] sm:$0xff] %vm52, 0.0
    $region25: #{tpu_custom_call.1} parent=1 // pred_fallthru
      _
    %v55 = vld [vmem:[#allocation2] sm:$0xff]
    %v56 = vld [vmem:[#allocation2 + $0x8] sm:$0xff]
    %v57 = vld [vmem:[#allocation3] sm:$0xf]
    %v58 = vld [vmem:[#allocation3 + $0x4] sm:$0xf]
    %v59 = vld [vmem:[#allocation6] sm:$0xf]
    %v60 = vld [vmem:[#allocation6 + $0x4] sm:$0xf]
    %v61 = vld [vmem:[#allocation6 + $0x8] sm:$0xf]
    %v62 = vld [vmem:[#allocation6 + $0xc] sm:$0xf]
    %v65 = vunpack.c.l.b16 %v57
    %v66 = vunpack.c.l.b16 %v58
    %v67 = vpack.c.b16 %v66, %v65
    %v72 = vunpack.c.l.b16 %v59
    %v73 = vunpack.c.l.b16 %v60
    %v74 = vunpack.c.l.b16 %v61
    %v75 = vunpack.c.l.b16 %v62
    %v76 = vpack.c.b16 %v73, %v72
    %v77 = vpack.c.b16 %v75, %v74
    %vm80 = vcmask 261120
    %v82 = vsel %vm80, %v67, 0
    %84 = vmatpush.bf16.msra.mxu0 0
    %85 = vmatpush.bf16.msra.mxu0 0
    %86 = vmatpush.bf16.msra.mxu0 0
    %87 = vmatpush.bf16.msra.mxu0 0
    %88 = vmatpush.bf16.msra.mxu0 0
    %89 = vmatpush.bf16.msra.mxu0 0
    %90 = vmatpush.bf16.msra.mxu0 %v77
    %91 = vmatpush.bf16.msra.mxu0 %v76
    %92 = vmatmul.bf16.gmra.mxu0 %v82
    %v93 = vpop.f32.mrf.mxu0
    %v94 = vadd.f32 0.0, %v93
    %v95 = vpop.f32.mrf.mxu0
    %v96 = vadd.f32 0.0, %v95
    %97 = vdwg.mxu0
    %v98 = vadd.f32 %v55, %v94
    %v99 = vadd.f32 %v56, %v96
    %vm100 = vcmask 785408
    %101 = vst.msk [vmem:[#allocation2] sm:$0xff] %vm100, %v98
    %102 = vst.msk [vmem:[#allocation2 + $0x8] sm:$0xff] %vm100, %v99
    // Predicated region
    $region26: #{tpu_custom_call.1} parent=1 // pred_check
      %p103 = pneg %p48
    $region27: #{tpu_custom_call.1} parent=1 // pred_check_branch
      %105 = sbr.rel (%p103) target = $region29
    $region28: #{tpu_custom_call.1} parent=1 // pred_region
      %v106 = vld [vmem:[#allocation2] sm:$0xff]
      %v107 = vld [vmem:[#allocation2 + $0x8] sm:$0xff]
      %v108 = vld [vmem:[%s2] sm:$0x1]
      %v110 = vperm.slane %v108, 0
      %v112 = vadd.f32 %v106, %v110
      %v113 = vadd.f32 %v107, %v110
      %v114 = vpack.c.bf16 %v112, %v112
      %v115 = vpack.c.bf16 %v113, %v113
      %vm116 = vcmask 781312
      %117 = vst.msk [vmem:[#allocation8] sm:$0xf] %vm116, %v114
      %118 = vst.msk [vmem:[#allocation8 + $0x4] sm:$0xf] %vm116, %v115
    $region29: #{tpu_custom_call.1} parent=1 // pred_fallthru
      _
    // Predicated region
    $region30: #{tpu_custom_call.1} parent=1 // pred_check
      _
    $region31: #{tpu_custom_call.1} parent=1 // pred_check_branch
      %120 = sbr.rel (0) target = $region33
    $region32: #{tpu_custom_call.1} parent=1 // pred_region
      %122 = vsyncadd [#allocation5], 0
      %s123 = sshll.u32 [#allocation8], 4
      %s124 = int_to_ptr.vmem [resolvable:$true] %s123
      %s125 = sshll.u32 %s3, 4
      %s126 = int_to_ptr.hbm [resolvable:$true] %s125
      %131 = dma.vmem_to_hbm [thread:$0]  %s124, 128, %s126, [#allocation5], 64, 64, 4
    $region33: #{tpu_custom_call.1} parent=1 // pred_fallthru
      _
    // Predicated region
    $region34: #{tpu_custom_call.1} parent=1 // pred_check
      _
    $region35: #{tpu_custom_call.1} parent=1 // pred_check_branch
      %133 = sbr.rel (0) target = $region37
    $region36: #{tpu_custom_call.1} parent=1 // pred_region
      %135 = dma.done [#allocation5], 128
    $region37: #{tpu_custom_call.1} parent=1 // pred_fallthru
      _
    %136 = vsyncpa [#allocation4], 1
    %137 = vsyncpa [#allocation7], 1
    %138 = vsyncpa [#allocation5], 1

</llo_original>
